<compile_context>
chip_gen: v7x
topology: tpu7x:2x2x1
jax: 0.10.0
libtpu: 0.0.40
codegen_flags: <defaults>
</compile_context>

<pallas_src>
import jax
import jax.numpy as jnp
from jax.experimental import pallas as pl
from jax.experimental.pallas import tpu as pltpu

_TARGET_BLOCK_BYTES = 2 * 1024 * 1024          # ~2 MiB per block (all gens safe)
_LANE_CANDIDATES = (2048, 1024, 512, 256, 128)  # lane-dense last dim candidates


def _h_sigmoid_kernel(x_ref, o_ref):
    x = x_ref[...]
    # relu6(x + 3) / 6, in the input dtype (matches torch semantics).
    o_ref[...] = (jnp.clip(x + 3, 0, 6) / 6).astype(o_ref.dtype)


def _round_up(a: int, b: int) -> int:
    return ((a + b - 1) // b) * b


def _pick_rows_per_block(rows: int, lane: int, itemsize: int, sublane: int) -> int:
    # Cap block at ~_TARGET_BLOCK_BYTES, constant across dtypes.
    tr_cap = max(sublane,
                 (_TARGET_BLOCK_BYTES // (lane * itemsize)) // sublane * sublane)
    # Keep >= ~4 grid steps for medium/large tensors (v7x megacore + pipelining).
    quarter = _round_up(pl.cdiv(rows, 4), sublane)
    tr = min(tr_cap, quarter)
    if tr >= rows:
        return rows  # single full-extent block: always layout-legal
    return tr        # multiple of sublane; ragged last block is masked by Pallas


def h_sigmoid(x: jax.Array) -> jax.Array:
    """Elementwise hard-sigmoid on any-shaped floating-point tensor (NCHW etc.)."""
    if not jnp.issubdtype(x.dtype, jnp.floating):
        raise TypeError("h_sigmoid expects a floating-point input "
                        f"(got {x.dtype}); integer `/ 6` would truncate.")
    orig_shape = x.shape
    dtype = x.dtype
    total = int(x.size)
    if total == 0:
        return x

    itemsize = jnp.dtype(dtype).itemsize
    sublane = max(8, 32 // itemsize)  # f32: 8, bf16: 16, (int8/fp8: 32)

    cost = pl.CostEstimate(flops=4 * total, transcendentals=0,
                           bytes_accessed=2 * total * itemsize)
    cparams = pltpu.CompilerParams(dimension_semantics=("parallel",))

    # --- Preferred path: free bitcast to a lane-dense (rows, lane) slab. ---
    lane = 0
    for cand in _LANE_CANDIDATES:
        if total % cand == 0:
            lane = cand
            break

    if lane:
        rows = total // lane
        x2d = x.reshape(rows, lane)                 # free reshape, no copy
        tr = _pick_rows_per_block(rows, lane, itemsize, sublane)
        grid = (pl.cdiv(rows, tr),)
        out2d = pl.pallas_call(
            _h_sigmoid_kernel,
            out_shape=jax.ShapeDtypeStruct((rows, lane), dtype),
            grid_spec=pl.GridSpec(
                grid=grid,
                in_specs=[pl.BlockSpec((tr, lane), lambda i: (i, 0))],
                out_specs=pl.BlockSpec((tr, lane), lambda i: (i, 0)),
            ),
            compiler_params=cparams,
            cost_estimate=cost,
        )(x2d)
        return out2d.reshape(orig_shape)

    # --- Fallback: total not a multiple of 128 -> flat 1-D blocks, ragged tail
    #     masked by Pallas (no jnp.pad, no tail-slice copy). ---
    flat = x.reshape(total)
    blk_cap = _TARGET_BLOCK_BYTES // itemsize       # multiple of 1024 for f32/bf16
    quarter = _round_up(pl.cdiv(total, 4), 1024)    # keep >= ~4 grid steps
    blk = min(blk_cap, quarter)
    if blk >= total:
        blk = total                                 # single full-extent block
    grid = (pl.cdiv(total, blk),)
    out1d = pl.pallas_call(
        _h_sigmoid_kernel,
        out_shape=jax.ShapeDtypeStruct((total,), dtype),
        grid_spec=pl.GridSpec(
            grid=grid,
            in_specs=[pl.BlockSpec((blk,), lambda i: (i,))],
            out_specs=pl.BlockSpec((blk,), lambda i: (i,)),
        ),
        compiler_params=cparams,
        cost_estimate=cost,
    )(flat)
    return out1d.reshape(orig_shape)


if __name__ == "__main__":
    key = jax.random.PRNGKey(0)

    # Primary NCHW input (total = 2048, power-of-two path: no pad, free reshape).
    x = jax.random.normal(key, (2, 4, 16, 16), dtype=jnp.float32) * 4.0
    y = jax.block_until_ready(h_sigmoid(x))
    y_ref = jnp.clip(x + 3.0, 0.0, 6.0) / 6.0
    assert y.shape == x.shape and y.dtype == x.dtype
    assert jnp.max(jnp.abs(y - y_ref)) < 1e-6

    # Non-128-divisible shape: exercises the flat 1-D ragged-block fallback.
    x2 = jax.random.normal(jax.random.PRNGKey(1), (3, 7, 33, 29),
                           dtype=jnp.float32) * 4.0
    y2 = jax.block_until_ready(h_sigmoid(x2))
    y2_ref = jnp.clip(x2 + 3.0, 0.0, 6.0) / 6.0
    assert jnp.max(jnp.abs(y2 - y2_ref)) < 1e-6

    # bf16 path: checks dtype-scaled row blocking and output dtype preservation.
    x3 = (jax.random.normal(jax.random.PRNGKey(2), (2, 8, 16, 16),
                            dtype=jnp.float32) * 4.0).astype(jnp.bfloat16)
    y3 = jax.block_until_ready(h_sigmoid(x3))
    y3_ref = jnp.clip(x3.astype(jnp.float32) + 3.0, 0.0, 6.0) / 6.0
    assert y3.dtype == jnp.bfloat16
    assert jnp.max(jnp.abs(y3.astype(jnp.float32) - y3_ref)) < 1e-2

    print("KERNEL_OK")
</pallas_src>

<mosaic_0001>
module attributes {stable_mosaic.version = 11 : i64} {
  func.func @_h_sigmoid_kernel(%arg0: i32, %arg1: memref<1x2048xf32, #tpu.memory_space<vmem>>, %arg2: memref<1x2048xf32, #tpu.memory_space<vmem>>) attributes {dimension_semantics = [#tpu.dimension_semantics<parallel>], iteration_bounds = array<i64: 1>, scalar_prefetch = 0 : i64, scratch_operands = 0 : i64, tpu.core_type = #tpu.core_type<tc>, window_params = [{transform_indices = @transform_0, window_bounds = array<i64: 1, 2048>}, {transform_indices = @transform_1, window_bounds = array<i64: 1, 2048>}]} {
    %c0 = arith.constant 0 : index
    %c0_0 = arith.constant 0 : index
    %0 = vector.load %arg1[%c0, %c0_0] : memref<1x2048xf32, #tpu.memory_space<vmem>>, vector<1x2048xf32>
    %cst = arith.constant 3.000000e+00 : f32
    %1 = vector.broadcast %cst : f32 to vector<1x2048xf32>
    %2 = arith.addf %0, %1 : vector<1x2048xf32>
    %c0_i32 = arith.constant 0 : i32
    %c6_i32 = arith.constant 6 : i32
    %3 = arith.sitofp %c0_i32 : i32 to f32
    %4 = vector.broadcast %3 : f32 to vector<1x2048xf32>
    %5 = arith.maximumf %4, %2 : vector<1x2048xf32>
    %6 = arith.sitofp %c6_i32 : i32 to f32
    %7 = vector.broadcast %6 : f32 to vector<1x2048xf32>
    %8 = arith.minimumf %7, %5 : vector<1x2048xf32>
    %cst_1 = arith.constant 6.000000e+00 : f32
    %9 = vector.broadcast %cst_1 : f32 to vector<1x2048xf32>
    %10 = arith.divf %8, %9 : vector<1x2048xf32>
    %c0_2 = arith.constant 0 : index
    %c0_3 = arith.constant 0 : index
    %11 = vector.load %arg2[%c0_2, %c0_3] : memref<1x2048xf32, #tpu.memory_space<vmem>>, vector<1x2048xf32>
    tpu.vector_store %arg2[%c0_2, %c0_3], %10 {strides = array<i32>} : memref<1x2048xf32, #tpu.memory_space<vmem>>, vector<1x2048xf32>,
    return
  }
  func.func @transform_0(%arg0: i32) -> (i32, i32) {
    %c0_i32 = arith.constant 0 : i32
    %c0_i32_0 = arith.constant 0 : i32
    return %arg0, %c0_i32 : i32, i32
  }
  func.func @transform_1(%arg0: i32) -> (i32, i32) {
    %c0_i32 = arith.constant 0 : i32
    %c0_i32_0 = arith.constant 0 : i32
    return %arg0, %c0_i32 : i32, i32
  }
}

</mosaic_0001>

<llo_original>
// kernel: tpu_custom_call.1
$region0: #{tpu_custom_call.1}
  #allocation0 [shape = 'u32[]', space=smem, size = 0x4, offset = 0x4, fixed_abs, tag = 'smem constant byte address 0x4 - core index']
  #allocation1 [shape = 'u32[144,128]{1,0:T(1,128)}', space=vmem, size = 0x12000, scoped, tag = 'internal scratch']
  %s0 = inlined_call_operand.hbm [shape: f32[1,2048], index: 0, kind: input, shape index: {}]
  %s1 = inlined_call_operand.hbm [shape: f32[1,2048], index: 1, kind: output, shape index: {}]
  %s2 = sld [smem:[#allocation0]]
  $region18: #{tpu_custom_call.1} parent=0
    _
  %s4 = ssub.s32 1, %s2
  %s5 = scalar_select 0, %s4, %s2
  $region1: #{tpu_custom_call.1} parent=0
    #allocation2 [shape = 'u8[8192]{0}', space=vmem, size = 0x2000, scoped, tag = 'input window, operand 0, single buffered']
    #allocation3 [shape = 's32[1]{0}', space=sflag, size = 0x4, scoped, tag = 'scoped memory for tpu_custom_call.1']
    #allocation4 [shape = 's32[1]{0}', space=sflag, size = 0x4, scoped, tag = 'scoped memory for tpu_custom_call.1']
    #allocation5 [shape = 'u8[8192]{0}', space=vmem, size = 0x2000, scoped, tag = 'output window, operand 0, single buffered']
    %6 = vsyncpa [#allocation3], 0
    %7 = vsyncpa [#allocation4], 0
    // Predicated region
    $region2: #{tpu_custom_call.1} parent=1 // pred_check
      _
    $region3: #{tpu_custom_call.1} parent=1 // pred_check_branch
      %9 = sbr.rel (0) target = $region5
    $region4: #{tpu_custom_call.1} parent=1 // pred_region
      %s11 = ssub.s32 256, 256
      %12 = vsyncadd [#allocation3], %s11
      %s14 = sshll.u32 [#allocation2], 4
      %s15 = int_to_ptr.vmem [resolvable:$true] %s14
      %17 = dma.hbm_to_vmem [thread:$0]  %s0, 256, %s15, [#allocation3]
    $region5: #{tpu_custom_call.1} parent=1 // pred_fallthru
      _
    // Predicated region
    $region6: #{tpu_custom_call.1} parent=1 // pred_check
      _
    $region7: #{tpu_custom_call.1} parent=1 // pred_check_branch
      %19 = sbr.rel (0) target = $region9
    $region8: #{tpu_custom_call.1} parent=1 // pred_region
      %20 = dma.done [#allocation3], 256
    $region9: #{tpu_custom_call.1} parent=1 // pred_fallthru
      _
    %v21 = vld [vmem:[#allocation2] sm:$0xff]
    %v22 = vld [vmem:[#allocation2 + $0x8] sm:$0xff]
    %v23 = vadd.f32 %v21, 3.0
    %v24 = vadd.f32 %v22, 3.0
    %v25 = vmax.f32 %v23, 0.0
    %v26 = vmax.f32 %v24, 0.0
    %v27 = vmin.f32 %v25, 6.0
    %v28 = vmin.f32 %v26, 6.0
    %v29 = vrcp.pop 6.0
    %v30 = vmul.f32 %v27, %v29
    %v31 = vmul.f32 %v28, %v29
    %32 = vst [vmem:[#allocation5] sm:$0xff] %v30
    %33 = vst [vmem:[#allocation5 + $0x8] sm:$0xff] %v31
    // Predicated region
    $region10: #{tpu_custom_call.1} parent=1 // pred_check
      _
    $region11: #{tpu_custom_call.1} parent=1 // pred_check_branch
      %35 = sbr.rel (0) target = $region13
    $region12: #{tpu_custom_call.1} parent=1 // pred_region
      %s37 = ssub.s32 256, 256
      %38 = vsyncadd [#allocation4], %s37
      %s40 = sshll.u32 [#allocation5], 4
      %s41 = int_to_ptr.vmem [resolvable:$true] %s40
      %43 = dma.vmem_to_hbm [thread:$0]  %s41, 256, %s1, [#allocation4]
    $region13: #{tpu_custom_call.1} parent=1 // pred_fallthru
      _
    // Predicated region
    $region14: #{tpu_custom_call.1} parent=1 // pred_check
      _
    $region15: #{tpu_custom_call.1} parent=1 // pred_check_branch
      %45 = sbr.rel (0) target = $region17
    $region16: #{tpu_custom_call.1} parent=1 // pred_region
      %46 = dma.done [#allocation4], 256
    $region17: #{tpu_custom_call.1} parent=1 // pred_fallthru
      _
    %47 = vsyncpa [#allocation3], 1
    %48 = vsyncpa [#allocation4], 1

</llo_original>
